<compile_context>
chip_gen: v5e
topology: v5e:2x2
jax: 0.10.0
libtpu: 0.0.40
codegen_flags: <defaults>
</compile_context>

<pallas_src>
import jax
import jax.numpy as jnp
from jax.experimental import pallas as pl
from jax.experimental.pallas import tpu as pltpu

_LANE = 128
_SUBLANE = 8
_NEG_BIG = -1e30  # finite "-inf" for padded action lanes: exp underflows to exactly 0


def _round_up(x, m):
    return (x + m - 1) // m * m


def net_kernel(x_ref, w1_ref, b1_ref, w2_ref, b2_ref, o_ref):
    # fc1: x @ w1 + b1, then ReLU.  The contraction dim (n_states) is unpadded; the
    # compiler pads it into vregs for free.  MXU accumulates in f32.
    h = jnp.dot(x_ref[...], w1_ref[...], preferred_element_type=jnp.float32)
    h = jnp.maximum(h + b1_ref[...], 0.0)
    # Match the (possibly bf16) weight dtype so the second matmul stays on the MXU's
    # low-precision path; this is a no-op in the default f32 configuration (so no
    # extra bf16 elementwise work on v5e).
    h = h.astype(w2_ref.dtype)

    # out: h @ w2 + b2.  Padded action lanes have zero weight columns and a -1e30
    # bias, so after softmax they carry exactly 0 probability.
    logits = jnp.dot(h, w2_ref[...], preferred_element_type=jnp.float32) + b2_ref[...]

    # Numerically-stable softmax over the lane-dense (padded) action axis.
    m = jnp.max(logits, axis=-1, keepdims=True)
    e = jnp.exp(logits - m)
    denom = jnp.sum(e, axis=-1, keepdims=True)
    # EUP approximate reciprocal + one Newton-Raphson step on the [TB,1] column:
    # keeps the divide off the VPU while making rows sum to 1 to ~1e-6.
    inv = pl.reciprocal(denom, approx=True)
    inv = inv * (2.0 - denom * inv)
    o_ref[...] = (e * inv).astype(o_ref.dtype)


def pad_net_params(w1, b1, w2, b2, *, compute_dtype=jnp.float32):
    """Pad parameters ONCE at init time (not per forward call).

    w1: [n_states, n_middles], b1: [n_middles] (or [1, n_middles]),
    w2: [n_middles, n_actions], b2: [n_actions] (or [1, n_actions]).
    Hidden / action axes are padded to the 128-lane grain; the n_states axis is
    left unpadded (it is only ever a contraction dim).  Weights may be stored in
    bf16 (compute_dtype) for halved HBM/VMEM traffic on v6e/v7x; biases stay f32.
    """
    n_states, n_middles = w1.shape
    n_actions = w2.shape[1]
    M = _round_up(max(n_middles, _LANE), _LANE)
    A = _round_up(max(n_actions, _LANE), _LANE)

    w1_p = jnp.zeros((n_states, M), compute_dtype).at[:, :n_middles].set(
        w1.astype(compute_dtype))
    b1_p = jnp.zeros((1, M), jnp.float32).at[:, :n_middles].set(
        jnp.reshape(b1, (1, n_middles)).astype(jnp.float32))
    w2_p = jnp.zeros((M, A), compute_dtype).at[:n_middles, :n_actions].set(
        w2.astype(compute_dtype))
    b2_p = jnp.full((1, A), _NEG_BIG, jnp.float32).at[:, :n_actions].set(
        jnp.reshape(b2, (1, n_actions)).astype(jnp.float32))
    return w1_p, b1_p, w2_p, b2_p


def net_forward(x, padded_params, n_actions, *, block_b=512, return_padded=False):
    """x: [B, n_states]; padded_params from pad_net_params.

    Returns softmax probabilities [B, n_actions] (or the padded lane-dense
    [Bp, A] slab when return_padded=True, so the caller can skip the slice and
    just read the first n_actions lanes)."""
    w1_p, b1_p, w2_p, b2_p = padded_params
    B, n_states = x.shape
    M = w1_p.shape[1]
    A = w2_p.shape[1]
    compute_dtype = w1_p.dtype
    itemsize = jnp.dtype(compute_dtype).itemsize

    # Batch tiling: TB is a multiple of 8 (sublane grain).  Small batches run in a
    # single grid step (grid=(1,)); larger batches get multiple "parallel" steps
    # that shard across v7x's two TensorCores.
    TB = _round_up(min(block_b, B), _SUBLANE)
    Bp = _round_up(B, TB)

    x_p = x.astype(compute_dtype)
    if Bp != B:
        x_p = jnp.zeros((Bp, n_states), compute_dtype).at[:B].set(x_p)

    grid = (Bp // TB,)

    # VMEM accounting: double-buffered x/out tiles + (conservatively double-counted)
    # resident weights/biases + hidden tile, +25% headroom.  Capped at 48 MiB so the
    # limit is also valid under v7x's 64 MiB physical VMEM (v5e/v6e have 128 MiB;
    # on v5e the explicit raise past the 16 MiB default is what matters).
    vmem_bytes = (2 * TB * n_states * itemsize        # x tile, double-buffered
                  + 2 * TB * A * 4                    # out tile, double-buffered
                  + 2 * (n_states * M + M * A) * itemsize  # weights (resident)
                  + 2 * (M + A) * 4                   # biases (resident)
                  + TB * M * 4)                       # hidden activations
    vmem_limit = int(min(max(int(1.25 * vmem_bytes), 4 << 20), 48 << 20))

    # Advisory cost of the PADDED work actually executed (not the logical sizes).
    cost = pl.CostEstimate(
        flops=2 * Bp * (n_states * M + M * A),
        transcendentals=Bp * A,
        bytes_accessed=(Bp * n_states * itemsize
                        + (n_states * M + M * A) * itemsize
                        + (M + A) * 4
                        + Bp * A * 4),
    )

    out_p = pl.pallas_call(
        net_kernel,
        out_shape=jax.ShapeDtypeStruct((Bp, A), jnp.float32),
        grid=grid,
        in_specs=[
            # x tile: full-extent (unpadded) feature axis, batch-pipelined rows.
            pl.BlockSpec((TB, n_states), lambda i: (i, 0)),
            # Weights / biases: constant block index -> VMEM-resident across steps.
            pl.BlockSpec((n_states, M), lambda i: (0, 0)),   # w1
            pl.BlockSpec((1, M), lambda i: (0, 0)),          # b1
            pl.BlockSpec((M, A), lambda i: (0, 0)),          # w2
            pl.BlockSpec((1, A), lambda i: (0, 0)),          # b2 (pad lanes = -1e30)
        ],
        out_specs=pl.BlockSpec((TB, A), lambda i: (i, 0)),   # lane-dense output slab
        compiler_params=pltpu.CompilerParams(
            dimension_semantics=("parallel",),  # megacore-shardable batch axis (v7x)
            vmem_limit_bytes=vmem_limit,
        ),
        cost_estimate=cost,
    )(x_p, w1_p, b1_p, w2_p, b2_p)

    if return_padded:
        return out_p
    return out_p[:B, :n_actions]


if __name__ == "__main__":
    # Small module dims (Linear 4 -> 32 -> 4); batch=256 keeps a single grid step
    # (TB=256, grid=(1,)) per the minimal-grid recommendation.
    batch, n_states, n_middles, n_actions = 256, 4, 32, 4

    key = jax.random.PRNGKey(0)
    k_x, k_w1, k_b1, k_w2, k_b2 = jax.random.split(key, 5)

    # Init mirroring the module: weights ~ Normal(0, 0.1); biases from default
    # Linear init U(-1/sqrt(fan_in), 1/sqrt(fan_in)).
    x = jax.random.normal(k_x, (batch, n_states), dtype=jnp.float32)
    w1 = 0.1 * jax.random.normal(k_w1, (n_states, n_middles), dtype=jnp.float32)
    b1 = jax.random.uniform(
        k_b1, (n_middles,), dtype=jnp.float32,
        minval=-1.0 / jnp.sqrt(n_states), maxval=1.0 / jnp.sqrt(n_states))
    w2 = 0.1 * jax.random.normal(k_w2, (n_middles, n_actions), dtype=jnp.float32)
    b2 = jax.random.uniform(
        k_b2, (n_actions,), dtype=jnp.float32,
        minval=-1.0 / jnp.sqrt(n_middles), maxval=1.0 / jnp.sqrt(n_middles))

    # Parameter padding is hoisted: done exactly once, outside the forward.
    params = pad_net_params(w1, b1, w2, b2, compute_dtype=jnp.float32)

    out = net_forward(x, params, n_actions)
    jax.block_until_ready(out)

    # Sanity check against pure-JAX reference (same semantics as the PyTorch forward).
    h_ref = jnp.maximum(x @ w1 + b1[None, :], 0.0)
    ref = jax.nn.softmax(h_ref @ w2 + b2[None, :], axis=1)
    assert out.shape == (batch, n_actions)
    assert jnp.allclose(out, ref, atol=1e-3, rtol=1e-3), float(jnp.max(jnp.abs(out - ref)))
    assert jnp.allclose(jnp.sum(out, axis=1), 1.0, atol=1e-3)

    print("KERNEL_OK")
</pallas_src>

<mosaic_0001>
module attributes {stable_mosaic.version = 11 : i64} {
  func.func @net_kernel(%arg0: i32, %arg1: memref<256x4xf32, #tpu.memory_space<vmem>>, %arg2: memref<4x128xf32, #tpu.memory_space<vmem>>, %arg3: memref<1x128xf32, #tpu.memory_space<vmem>>, %arg4: memref<128x128xf32, #tpu.memory_space<vmem>>, %arg5: memref<1x128xf32, #tpu.memory_space<vmem>>, %arg6: memref<256x128xf32, #tpu.memory_space<vmem>>) attributes {dimension_semantics = [#tpu.dimension_semantics<parallel>], iteration_bounds = array<i64: 1>, scalar_prefetch = 0 : i64, scratch_operands = 0 : i64, tpu.core_type = #tpu.core_type<tc>, window_params = [{transform_indices = @transform_0, window_bounds = array<i64: 256, 4>}, {pipeline_mode = #tpu.pipeline_mode<synchronous>, transform_indices = @transform_1, window_bounds = array<i64: 4, 128>}, {pipeline_mode = #tpu.pipeline_mode<synchronous>, transform_indices = @transform_2, window_bounds = array<i64: 1, 128>}, {pipeline_mode = #tpu.pipeline_mode<synchronous>, transform_indices = @transform_3, window_bounds = array<i64: 128, 128>}, {pipeline_mode = #tpu.pipeline_mode<synchronous>, transform_indices = @transform_4, window_bounds = array<i64: 1, 128>}, {transform_indices = @transform_5, window_bounds = array<i64: 256, 128>}]} {
    %c0 = arith.constant 0 : index
    %c0_0 = arith.constant 0 : index
    %0 = vector.load %arg1[%c0, %c0_0] : memref<256x4xf32, #tpu.memory_space<vmem>>, vector<256x4xf32>
    %c0_1 = arith.constant 0 : index
    %c0_2 = arith.constant 0 : index
    %1 = vector.load %arg2[%c0_1, %c0_2] : memref<4x128xf32, #tpu.memory_space<vmem>>, vector<4x128xf32>
    %cst = arith.constant dense<0.000000e+00> : vector<256x128xf32>
    %2 = tpu.matmul %0, %1, %cst {dimension_numbers = #tpu.dot_dimension_numbers<[1], [0], [0], [1], [0, 0, 1, 1], [], []>} : vector<256x4xf32>, vector<4x128xf32>, vector<256x128xf32> -> vector<256x128xf32>
    %c0_3 = arith.constant 0 : index
    %c0_4 = arith.constant 0 : index
    %3 = vector.load %arg3[%c0_3, %c0_4] : memref<1x128xf32, #tpu.memory_space<vmem>>, vector<1x128xf32>
    %4 = vector.broadcast %3 : vector<1x128xf32> to vector<256x128xf32>
    %5 = arith.addf %2, %4 : vector<256x128xf32>
    %cst_5 = arith.constant 0.000000e+00 : f32
    %6 = vector.broadcast %cst_5 : f32 to vector<256x128xf32>
    %7 = arith.maximumf %5, %6 : vector<256x128xf32>
    %c0_6 = arith.constant 0 : index
    %c0_7 = arith.constant 0 : index
    %8 = vector.load %arg4[%c0_6, %c0_7] : memref<128x128xf32, #tpu.memory_space<vmem>>, vector<128x128xf32>
    %cst_8 = arith.constant dense<0.000000e+00> : vector<256x128xf32>
    %9 = tpu.matmul %7, %8, %cst_8 {dimension_numbers = #tpu.dot_dimension_numbers<[1], [0], [0], [1], [0, 0, 1, 1], [], []>} : vector<256x128xf32>, vector<128x128xf32>, vector<256x128xf32> -> vector<256x128xf32>
    %c0_9 = arith.constant 0 : index
    %c0_10 = arith.constant 0 : index
    %10 = vector.load %arg5[%c0_9, %c0_10] : memref<1x128xf32, #tpu.memory_space<vmem>>, vector<1x128xf32>
    %11 = vector.broadcast %10 : vector<1x128xf32> to vector<256x128xf32>
    %12 = arith.addf %9, %11 : vector<256x128xf32>
    %cst_11 = arith.constant dense<0xFF800000> : vector<256xf32>
    %13 = vector.multi_reduction <maximumf>, %12, %cst_11 [1] : vector<256x128xf32> to vector<256xf32>
    %14 = vector.shape_cast %13 : vector<256xf32> to vector<256x1xf32>
    %15 = vector.broadcast %14 : vector<256x1xf32> to vector<256x128xf32>
    %16 = arith.subf %12, %15 : vector<256x128xf32>
    %17 = math.exp %16 : vector<256x128xf32>
    %cst_12 = arith.constant dense<0.000000e+00> : vector<256xf32>
    %18 = vector.multi_reduction <add>, %17, %cst_12 [1] : vector<256x128xf32> to vector<256xf32>
    %19 = vector.shape_cast %18 : vector<256xf32> to vector<256x1xf32>
    %20 = tpu.reciprocal %19 {approx = true} : vector<256x1xf32> -> vector<256x1xf32>
    %21 = arith.mulf %19, %20 : vector<256x1xf32>
    %cst_13 = arith.constant 2.000000e+00 : f32
    %22 = vector.broadcast %cst_13 : f32 to vector<256x1xf32>
    %23 = arith.subf %22, %21 : vector<256x1xf32>
    %24 = arith.mulf %20, %23 : vector<256x1xf32>
    %25 = vector.broadcast %24 : vector<256x1xf32> to vector<256x128xf32>
    %26 = arith.mulf %17, %25 : vector<256x128xf32>
    %c0_14 = arith.constant 0 : index
    %c0_15 = arith.constant 0 : index
    %27 = vector.load %arg6[%c0_14, %c0_15] : memref<256x128xf32, #tpu.memory_space<vmem>>, vector<256x128xf32>
    tpu.vector_store %arg6[%c0_14, %c0_15], %26 {strides = array<i32>} : memref<256x128xf32, #tpu.memory_space<vmem>>, vector<256x128xf32>,
    return
  }
  func.func @transform_0(%arg0: i32) -> (i32, i32) {
    %c0_i32 = arith.constant 0 : i32
    %c0_i32_0 = arith.constant 0 : i32
    return %arg0, %c0_i32 : i32, i32
  }
  func.func @transform_1(%arg0: i32) -> (i32, i32) {
    %c0_i32 = arith.constant 0 : i32
    %c0_i32_0 = arith.constant 0 : i32
    %c0_i32_1 = arith.constant 0 : i32
    return %c0_i32, %c0_i32_0 : i32, i32
  }
  func.func @transform_2(%arg0: i32) -> (i32, i32) {
    %c0_i32 = arith.constant 0 : i32
    %c0_i32_0 = arith.constant 0 : i32
    %c0_i32_1 = arith.constant 0 : i32
    return %c0_i32, %c0_i32_0 : i32, i32
  }
  func.func @transform_3(%arg0: i32) -> (i32, i32) {
    %c0_i32 = arith.constant 0 : i32
    %c0_i32_0 = arith.constant 0 : i32
    %c0_i32_1 = arith.constant 0 : i32
    return %c0_i32, %c0_i32_0 : i32, i32
  }
  func.func @transform_4(%arg0: i32) -> (i32, i32) {
    %c0_i32 = arith.constant 0 : i32
    %c0_i32_0 = arith.constant 0 : i32
    %c0_i32_1 = arith.constant 0 : i32
    return %c0_i32, %c0_i32_0 : i32, i32
  }
  func.func @transform_5(%arg0: i32) -> (i32, i32) {
    %c0_i32 = arith.constant 0 : i32
    %c0_i32_0 = arith.constant 0 : i32
    return %arg0, %c0_i32 : i32, i32
  }
}

</mosaic_0001>

<llo_original>
// kernel: tpu_custom_call.1
$region0: #{tpu_custom_call.1}
  #allocation0 [shape = 'u32[]', space=smem, size = 0x4, offset = 0x4, fixed_abs, tag = 'smem constant byte address 0x4 - core index']
  #allocation1 [shape = 'u32[72,128]{1,0:T(1,128)}', space=vmem, size = 0x9000, scoped, tag = 'internal scratch']
  %s0 = inlined_call_operand.vmem [shape: f32[256,4], index: 0, kind: input, shape index: {}]
  %s1 = inlined_call_operand.vmem [shape: f32[4,128], index: 1, kind: input, shape index: {}]
  %s2 = inlined_call_operand.vmem [shape: f32[1,128], index: 2, kind: input, shape index: {}]
  %s3 = inlined_call_operand.vmem [shape: f32[128,128], index: 3, kind: input, shape index: {}]
  %s4 = inlined_call_operand.vmem [shape: f32[1,128], index: 4, kind: input, shape index: {}]
  %s5 = inlined_call_operand.hbm [shape: f32[256,128], index: 5, kind: output, shape index: {}]
  %s6 = sld [smem:[#allocation0]]
  $region30: #{tpu_custom_call.1} parent=0
    _
  %s8 = ssub.s32 1, %s6
  %s9 = scalar_select 0, %s8, %s6
  $region1: #{tpu_custom_call.1} parent=0
    #allocation2 [shape = 'u8[131072]{0}', space=vmem, size = 0x20000, scoped, tag = 'output window, operand 0, single buffered']
    #allocation3 [shape = 's32[1]{0}', space=sflag, size = 0x4, scoped, tag = 'scoped memory for tpu_custom_call.1']
    %10 = vsyncpa [#allocation3], 0
    // Predicated region
    $region2: #{tpu_custom_call.1} parent=1 // pred_check
      _
    $region3: #{tpu_custom_call.1} parent=1 // pred_check_branch
      %12 = sbr.rel (0) target = $region5
    $region4: #{tpu_custom_call.1} parent=1 // pred_region
      _
    $region5: #{tpu_custom_call.1} parent=1 // pred_fallthru
      _
    // Predicated region
    $region6: #{tpu_custom_call.1} parent=1 // pred_check
      _
    $region7: #{tpu_custom_call.1} parent=1 // pred_check_branch
      %14 = sbr.rel (0) target = $region9
    $region8: #{tpu_custom_call.1} parent=1 // pred_region
      _
    $region9: #{tpu_custom_call.1} parent=1 // pred_fallthru
      _
    // Predicated region
    $region10: #{tpu_custom_call.1} parent=1 // pred_check
      _
    $region11: #{tpu_custom_call.1} parent=1 // pred_check_branch
      %16 = sbr.rel (0) target = $region13
    $region12: #{tpu_custom_call.1} parent=1 // pred_region
      _
    $region13: #{tpu_custom_call.1} parent=1 // pred_fallthru
      _
    // Predicated region
    $region14: #{tpu_custom_call.1} parent=1 // pred_check
      _
    $region15: #{tpu_custom_call.1} parent=1 // pred_check_branch
      %18 = sbr.rel (0) target = $region17
    $region16: #{tpu_custom_call.1} parent=1 // pred_region
      _
    $region17: #{tpu_custom_call.1} parent=1 // pred_fallthru
      _
    // Predicated region
    $region18: #{tpu_custom_call.1} parent=1 // pred_check
      _
    $region19: #{tpu_custom_call.1} parent=1 // pred_check_branch
      %20 = sbr.rel (0) target = $region21
    $region20: #{tpu_custom_call.1} parent=1 // pred_region
      _
    $region21: #{tpu_custom_call.1} parent=1 // pred_fallthru
      _
    %v21 = vld [vmem:[%s0] sm:$0xff]
    %v22 = vld [vmem:[%s0 + $0x8] sm:$0xff]
    %v23 = vld [vmem:[%s0 + $0x10] sm:$0xff]
    %v24 = vld [vmem:[%s0 + $0x18] sm:$0xff]
    %v25 = vld [vmem:[%s0 + $0x20] sm:$0xff]
    %v26 = vld [vmem:[%s0 + $0x28] sm:$0xff]
    %v27 = vld [vmem:[%s0 + $0x30] sm:$0xff]
    %v28 = vld [vmem:[%s0 + $0x38] sm:$0xff]
    %v29 = vld [vmem:[%s0 + $0x40] sm:$0xff]
    %v30 = vld [vmem:[%s0 + $0x48] sm:$0xff]
    %v31 = vld [vmem:[%s0 + $0x50] sm:$0xff]
    %v32 = vld [vmem:[%s0 + $0x58] sm:$0xff]
    %v33 = vld [vmem:[%s0 + $0x60] sm:$0xff]
    %v34 = vld [vmem:[%s0 + $0x68] sm:$0xff]
    %v35 = vld [vmem:[%s0 + $0x70] sm:$0xff]
    %v36 = vld [vmem:[%s0 + $0x78] sm:$0xff]
    %v37 = vld [vmem:[%s0 + $0x80] sm:$0xff]
    %v38 = vld [vmem:[%s0 + $0x88] sm:$0xff]
    %v39 = vld [vmem:[%s0 + $0x90] sm:$0xff]
    %v40 = vld [vmem:[%s0 + $0x98] sm:$0xff]
    %v41 = vld [vmem:[%s0 + $0xa0] sm:$0xff]
    %v42 = vld [vmem:[%s0 + $0xa8] sm:$0xff]
    %v43 = vld [vmem:[%s0 + $0xb0] sm:$0xff]
    %v44 = vld [vmem:[%s0 + $0xb8] sm:$0xff]
    %v45 = vld [vmem:[%s0 + $0xc0] sm:$0xff]
    %v46 = vld [vmem:[%s0 + $0xc8] sm:$0xff]
    %v47 = vld [vmem:[%s0 + $0xd0] sm:$0xff]
    %v48 = vld [vmem:[%s0 + $0xd8] sm:$0xff]
    %v49 = vld [vmem:[%s0 + $0xe0] sm:$0xff]
    %v50 = vld [vmem:[%s0 + $0xe8] sm:$0xff]
    %v51 = vld [vmem:[%s0 + $0xf0] sm:$0xff]
    %v52 = vld [vmem:[%s0 + $0xf8] sm:$0xff]
    %v53 = vld [vmem:[%s1] sm:$0xf]
    %v54 = vld [vmem:[%s2] sm:$0x1]
    %v56 = vperm.slane %v54, 0
    %vm58 = vcmask 31744
    %v60 = vsel %vm58, %v21, 0
    %v63 = vsel %vm58, %v22, 0
    %v66 = vsel %vm58, %v23, 0
    %v69 = vsel %vm58, %v24, 0
    %v72 = vsel %vm58, %v25, 0
    %v75 = vsel %vm58, %v26, 0
    %v78 = vsel %vm58, %v27, 0
    %v81 = vsel %vm58, %v28, 0
    %v84 = vsel %vm58, %v29, 0
    %v87 = vsel %vm58, %v30, 0
    %v90 = vsel %vm58, %v31, 0
    %v93 = vsel %vm58, %v32, 0
    %v96 = vsel %vm58, %v33, 0
    %v99 = vsel %vm58, %v34, 0
    %v102 = vsel %vm58, %v35, 0
    %v105 = vsel %vm58, %v36, 0
    %v108 = vsel %vm58, %v37, 0
    %v111 = vsel %vm58, %v38, 0
    %v114 = vsel %vm58, %v39, 0
    %v117 = vsel %vm58, %v40, 0
    %v120 = vsel %vm58, %v41, 0
    %v123 = vsel %vm58, %v42, 0
    %v126 = vsel %vm58, %v43, 0
    %v129 = vsel %vm58, %v44, 0
    %v132 = vsel %vm58, %v45, 0
    %v135 = vsel %vm58, %v46, 0
    %v138 = vsel %vm58, %v47, 0
    %v141 = vsel %vm58, %v48, 0
    %v144 = vsel %vm58, %v49, 0
    %v147 = vsel %vm58, %v50, 0
    %v150 = vsel %vm58, %v51, 0
    %v153 = vsel %vm58, %v52, 0
    %vm155 = vcmask 1043456
    %v157 = vsel %vm155, %v53, 0
    %159 = vmatpush.msra.mxu0 0.0
    %160 = vmatpush.msra.mxu0 0.0
    %161 = vmatpush.msra.mxu0 0.0
    %162 = vmatpush.msra.mxu0 0.0
    %163 = vmatpush.msra.mxu0 0.0
    %164 = vmatpush.msra.mxu0 0.0
    %165 = vmatpush.msra.mxu0 0.0
    %166 = vmatpush.msra.mxu0 0.0
    %167 = vmatpush.msra.mxu0 0.0
    %168 = vmatpush.msra.mxu0 0.0
    %169 = vmatpush.msra.mxu0 0.0
    %170 = vmatpush.msra.mxu0 0.0
    %171 = vmatpush.msra.mxu0 0.0
    %172 = vmatpush.msra.mxu0 0.0
    %173 = vmatpush.msra.mxu0 0.0
    %174 = vmatpush.msra.mxu0 %v157
    %175 = vmatmul.f32.gmra.mxu0 %v60
    %v176 = vpop.f32.mrf.mxu0
    %v177 = vadd.f32 %v56, %v176
    %178 = vmatmul.f32.gmra.mxu0 %v63
    %v179 = vpop.f32.mrf.mxu0
    %v180 = vadd.f32 %v56, %v179
    %181 = vmatmul.f32.gmra.mxu0 %v66
    %v182 = vpop.f32.mrf.mxu0
    %v183 = vadd.f32 %v56, %v182
    %184 = vmatmul.f32.gmra.mxu0 %v69
    %v185 = vpop.f32.mrf.mxu0
    %v186 = vadd.f32 %v56, %v185
    %187 = vmatmul.f32.gmra.mxu0 %v72
    %v188 = vpop.f32.mrf.mxu0
    %v189 = vadd.f32 %v56, %v188
    %190 = vmatmul.f32.gmra.mxu0 %v75
    %v191 = vpop.f32.mrf.mxu0
    %v192 = vadd.f32 %v56, %v191
    %193 = vmatmul.f32.gmra.mxu0 %v78
    %v194 = vpop.f32.mrf.mxu0
    %v195 = vadd.f32 %v56, %v194
    %196 = vmatmul.f32.gmra.mxu0 %v81
    %v197 = vpop.f32.mrf.mxu0
    %v198 = vadd.f32 %v56, %v197
    %199 = vmatmul.f32.gmra.mxu0 %v84
    %v200 = vpop.f32.mrf.mxu0
    %v201 = vadd.f32 %v56, %v200
    %202 = vmatmul.f32.gmra.mxu0 %v87
    %v203 = vpop.f32.mrf.mxu0
    %v204 = vadd.f32 %v56, %v203
    %205 = vmatmul.f32.gmra.mxu0 %v90
    %v206 = vpop.f32.mrf.mxu0
    %v207 = vadd.f32 %v56, %v206
    %208 = vmatmul.f32.gmra.mxu0 %v93
    %v209 = vpop.f32.mrf.mxu0
    %v210 = vadd.f32 %v56, %v209
    %211 = vmatmul.f32.gmra.mxu0 %v96
    %v212 = vpop.f32.mrf.mxu0
    %v213 = vadd.f32 %v56, %v212
    %214 = vmatmul.f32.gmra.mxu0 %v99
    %v215 = vpop.f32.mrf.mxu0
    %v216 = vadd.f32 %v56, %v215
    %217 = vmatmul.f32.gmra.mxu0 %v102
    %v218 = vpop.f32.mrf.mxu0
    %v219 = vadd.f32 %v56, %v218
    %220 = vmatmul.f32.gmra.mxu0 %v105
    %v221 = vpop.f32.mrf.mxu0
    %v222 = vadd.f32 %v56, %v221
    %223 = vmatmul.f32.gmra.mxu0 %v108
    %v224 = vpop.f32.mrf.mxu0
    %v225 = vadd.f32 %v56, %v224
    %226 = vmatmul.f32.gmra.mxu0 %v111
    %v227 = vpop.f32.mrf.mxu0
    %v228 = vadd.f32 %v56, %v227
    %229 = vmatmul.f32.gmra.mxu0 %v114
    %v230 = vpop.f32.mrf.mxu0
    %v231 = vadd.f32 %v56, %v230
    %232 = vmatmul.f32.gmra.mxu0 %v117
    %v233 = vpop.f32.mrf.mxu0
    %v234 = vadd.f32 %v56, %v233
    %235 = vmatmul.f32.gmra.mxu0 %v120
    %v236 = vpop.f32.mrf.mxu0
    %v237 = vadd.f32 %v56, %v236
    %238 = vmatmul.f32.gmra.mxu0 %v123
    %v239 = vpop.f32.mrf.mxu0
    %v240 = vadd.f32 %v56, %v239
    %241 = vmatmul.f32.gmra.mxu0 %v126
    %v242 = vpop.f32.mrf.mxu0
    %v243 = vadd.f32 %v56, %v242
    %244 = vmatmul.f32.gmra.mxu0 %v129
    %v245 = vpop.f32.mrf.mxu0
    %v246 = vadd.f32 %v56, %v245
    %247 = vmatmul.f32.gmra.mxu0 %v132
    %v248 = vpop.f32.mrf.mxu0
    %v249 = vadd.f32 %v56, %v248
    %250 = vmatmul.f32.gmra.mxu0 %v135
    %v251 = vpop.f32.mrf.mxu0
    %v252 = vadd.f32 %v56, %v251
    %253 = vmatmul.f32.gmra.mxu0 %v138
    %v254 = vpop.f32.mrf.mxu0
    %v255 = vadd.f32 %v56, %v254
    %256 = vmatmul.f32.gmra.mxu0 %v141
    %v257 = vpop.f32.mrf.mxu0
    %v258 = vadd.f32 %v56, %v257
    %259 = vmatmul.f32.gmra.mxu0 %v144
    %v260 = vpop.f32.mrf.mxu0
    %v261 = vadd.f32 %v56, %v260
    %262 = vmatmul.f32.gmra.mxu0 %v147
    %v263 = vpop.f32.mrf.mxu0
    %v264 = vadd.f32 %v56, %v263
    %265 = vmatmul.f32.gmra.mxu0 %v150
    %v266 = vpop.f32.mrf.mxu0
    %v267 = vadd.f32 %v56, %v266
    %268 = vmatmul.f32.gmra.mxu0 %v153
    %v269 = vpop.f32.mrf.mxu0
    %v270 = vadd.f32 %v56, %v269
    %271 = vdwg.mxu0
    %v272 = vmax.f32 %v177, 0.0
    %v273 = vmax.f32 %v180, 0.0
    %v274 = vmax.f32 %v183, 0.0
    %v275 = vmax.f32 %v186, 0.0
    %v276 = vmax.f32 %v189, 0.0
    %v277 = vmax.f32 %v192, 0.0
    %v278 = vmax.f32 %v195, 0.0
    %v279 = vmax.f32 %v198, 0.0
    %v280 = vmax.f32 %v201, 0.0
    %v281 = vmax.f32 %v204, 0.0
    %v282 = vmax.f32 %v207, 0.0
    %v283 = vmax.f32 %v210, 0.0
    %v284 = vmax.f32 %v213, 0.0
    %v285 = vmax.f32 %v216, 0.0
    %v286 = vmax.f32 %v219, 0.0
    %v287 = vmax.f32 %v222, 0.0
    %v288 = vmax.f32 %v225, 0.0
    %v289 = vmax.f32 %v228, 0.0
    %v290 = vmax.f32 %v231, 0.0
    %v291 = vmax.f32 %v234, 0.0
    %v292 = vmax.f32 %v237, 0.0
    %v293 = vmax.f32 %v240, 0.0
    %v294 = vmax.f32 %v243, 0.0
    %v295 = vmax.f32 %v246, 0.0
    %v296 = vmax.f32 %v249, 0.0
    %v297 = vmax.f32 %v252, 0.0
    %v298 = vmax.f32 %v255, 0.0
    %v299 = vmax.f32 %v258, 0.0
    %v300 = vmax.f32 %v261, 0.0
    %v301 = vmax.f32 %v264, 0.0
    %v302 = vmax.f32 %v267, 0.0
    %v303 = vmax.f32 %v270, 0.0
    %v304 = vld [vmem:[%s3] sm:$0xff]
    %v305 = vld [vmem:[%s3 + $0x8] sm:$0xff]
    %v306 = vld [vmem:[%s3 + $0x10] sm:$0xff]
    %v307 = vld [vmem:[%s3 + $0x18] sm:$0xff]
    %v308 = vld [vmem:[%s3 + $0x20] sm:$0xff]
    %v309 = vld [vmem:[%s3 + $0x28] sm:$0xff]
    %v310 = vld [vmem:[%s3 + $0x30] sm:$0xff]
    %v311 = vld [vmem:[%s3 + $0x38] sm:$0xff]
    %v312 = vld [vmem:[%s3 + $0x40] sm:$0xff]
    %v313 = vld [vmem:[%s3 + $0x48] sm:$0xff]
    %v314 = vld [vmem:[%s3 + $0x50] sm:$0xff]
    %v315 = vld [vmem:[%s3 + $0x58] sm:$0xff]
    %v316 = vld [vmem:[%s3 + $0x60] sm:$0xff]
    %v317 = vld [vmem:[%s3 + $0x68] sm:$0xff]
    %v318 = vld [vmem:[%s3 + $0x70] sm:$0xff]
    %v319 = vld [vmem:[%s3 + $0x78] sm:$0xff]
    %v320 = vld [vmem:[%s4] sm:$0x1]
    %v322 = vperm.slane %v320, 0
    %324 = vmatpush.msra.mxu0 %v319
    %325 = vmatpush.msra.mxu0 %v318
    %326 = vmatpush.msra.mxu0 %v317
    %327 = vmatpush.msra.mxu0 %v316
    %328 = vmatpush.msra.mxu0 %v315
    %329 = vmatpush.msra.mxu0 %v314
    %330 = vmatpush.msra.mxu0 %v313
    %331 = vmatpush.msra.mxu0 %v312
    %332 = vmatpush.msra.mxu0 %v311
    %333 = vmatpush.msra.mxu0 %v310
    %334 = vmatpush.msra.mxu0 %v309
    %335 = vmatpush.msra.mxu0 %v308
    %336 = vmatpush.msra.mxu0 %v307
    %337 = vmatpush.msra.mxu0 %v306
    %338 = vmatpush.msra.mxu0 %v305
    %339 = vmatpush.msra.mxu0 %v304
    %340 = vmatmul.f32.gmra.mxu0 %v272
    %v341 = vpop.f32.mrf.mxu0
    %v342 = vadd.f32 %v322, %v341
    %343 = vmatmul.f32.gmra.mxu0 %v273
    %v344 = vpop.f32.mrf.mxu0
    %v345 = vadd.f32 %v322, %v344
    %346 = vmatmul.f32.gmra.mxu0 %v274
    %v347 = vpop.f32.mrf.mxu0
    %v348 = vadd.f32 %v322, %v347
    %349 = vmatmul.f32.gmra.mxu0 %v275
    %v350 = vpop.f32.mrf.mxu0
    %v351 = vadd.f32 %v322, %v350
    %352 = vmatmul.f32.gmra.mxu0 %v276
    %v353 = vpop.f32.mrf.mxu0
    %v354 = vadd.f32 %v322, %v353
    %355 = vmatmul.f32.gmra.mxu0 %v277
    %v356 = vpop.f32.mrf.mxu0
    %v357 = vadd.f32 %v322, %v356
    %358 = vmatmul.f32.gmra.mxu0 %v278
    %v359 = vpop.f32.mrf.mxu0
    %v360 = vadd.f32 %v322, %v359
    %361 = vmatmul.f32.gmra.mxu0 %v279
    %v362 = vpop.f32.mrf.mxu0
    %v363 = vadd.f32 %v322, %v362
    %364 = vmatmul.f32.gmra.mxu0 %v280
    %v365 = vpop.f32.mrf.mxu0
    %v366 = vadd.f32 %v322, %v365
    %367 = vmatmul.f32.gmra.mxu0 %v281
    %v368 = vpop.f32.mrf.mxu0
    %v369 = vadd.f32 %v322, %v368
    %370 = vmatmul.f32.gmra.mxu0 %v282
    %v371 = vpop.f32.mrf.mxu0
    %v372 = vadd.f32 %v322, %v371
    %373 = vmatmul.f32.gmra.mxu0 %v283
    %v374 = vpop.f32.mrf.mxu0
    %v375 = vadd.f32 %v322, %v374
    %376 = vmatmul.f32.gmra.mxu0 %v284
    %v377 = vpop.f32.mrf.mxu0
    %v378 = vadd.f32 %v322, %v377
    %379 = vmatmul.f32.gmra.mxu0 %v285
    %v380 = vpop.f32.mrf.mxu0
    %v381 = vadd.f32 %v322, %v380
    %382 = vmatmul.f32.gmra.mxu0 %v286
    %v383 = vpop.f32.mrf.mxu0
    %v384 = vadd.f32 %v322, %v383
    %385 = vmatmul.f32.gmra.mxu0 %v287
    %v386 = vpop.f32.mrf.mxu0
    %v387 = vadd.f32 %v322, %v386
    %388 = vmatmul.f32.gmra.mxu0 %v288
    %v389 = vpop.f32.mrf.mxu0
    %v390 = vadd.f32 %v322, %v389
    %391 = vmatmul.f32.gmra.mxu0 %v289
    %v392 = vpop.f32.mrf.mxu0
    %v393 = vadd.f32 %v322, %v392
    %394 = vmatmul.f32.gmra.mxu0 %v290
    %v395 = vpop.f32.mrf.mxu0
    %v396 = vadd.f32 %v322, %v395
    %397 = vmatmul.f32.gmra.mxu0 %v291
    %v398 = vpop.f32.mrf.mxu0
    %v399 = vadd.f32 %v322, %v398
    %400 = vmatmul.f32.gmra.mxu0 %v292
    %v401 = vpop.f32.mrf.mxu0
    %v402 = vadd.f32 %v322, %v401
    %403 = vmatmul.f32.gmra.mxu0 %v293
    %v404 = vpop.f32.mrf.mxu0
    %v405 = vadd.f32 %v322, %v404
    %406 = vmatmul.f32.gmra.mxu0 %v294
    %v407 = vpop.f32.mrf.mxu0
    %v408 = vadd.f32 %v322, %v407
    %409 = vmatmul.f32.gmra.mxu0 %v295
    %v410 = vpop.f32.mrf.mxu0
    %v411 = vadd.f32 %v322, %v410
    %412 = vmatmul.f32.gmra.mxu0 %v296
    %v413 = vpop.f32.mrf.mxu0
    %v414 = vadd.f32 %v322, %v413
    %415 = vmatmul.f32.gmra.mxu0 %v297
    %v416 = vpop.f32.mrf.mxu0
    %v417 = vadd.f32 %v322, %v416
    %418 = vmatmul.f32.gmra.mxu0 %v298
    %v419 = vpop.f32.mrf.mxu0
    %v420 = vadd.f32 %v322, %v419
    %421 = vmatmul.f32.gmra.mxu0 %v299
    %v422 = vpop.f32.mrf.mxu0
    %v423 = vadd.f32 %v322, %v422
    %424 = vmatmul.f32.gmra.mxu0 %v300
    %v425 = vpop.f32.mrf.mxu0
    %v426 = vadd.f32 %v322, %v425
    %427 = vmatmul.f32.gmra.mxu0 %v301
    %v428 = vpop.f32.mrf.mxu0
    %v429 = vadd.f32 %v322, %v428
    %430 = vmatmul.f32.gmra.mxu0 %v302
    %v431 = vpop.f32.mrf.mxu0
    %v432 = vadd.f32 %v322, %v431
    %433 = vmatmul.f32.gmra.mxu0 %v303
    %v434 = vpop.f32.mrf.mxu0
    %v435 = vadd.f32 %v322, %v434
    %436 = vdwg.mxu0
    %437 = vmax.xlane.f32.xlu0 %v342
    %v438 = vpop.xlane.xlu0 %437
    %439 = vmax.xlane.f32.xlu0 %v345
    %v440 = vpop.xlane.xlu0 %439
    %441 = vmax.xlane.f32.xlu0 %v348
    %v442 = vpop.xlane.xlu0 %441
    %443 = vmax.xlane.f32.xlu0 %v351
    %v444 = vpop.xlane.xlu0 %443
    %445 = vmax.xlane.f32.xlu0 %v354
    %v446 = vpop.xlane.xlu0 %445
    %447 = vmax.xlane.f32.xlu0 %v357
    %v448 = vpop.xlane.xlu0 %447
    %449 = vmax.xlane.f32.xlu0 %v360
    %v450 = vpop.xlane.xlu0 %449
    %451 = vmax.xlane.f32.xlu0 %v363
    %v452 = vpop.xlane.xlu0 %451
    %453 = vmax.xlane.f32.xlu0 %v366
    %v454 = vpop.xlane.xlu0 %453
    %455 = vmax.xlane.f32.xlu0 %v369
    %v456 = vpop.xlane.xlu0 %455
    %457 = vmax.xlane.f32.xlu0 %v372
    %v458 = vpop.xlane.xlu0 %457
    %459 = vmax.xlane.f32.xlu0 %v375
    %v460 = vpop.xlane.xlu0 %459
    %461 = vmax.xlane.f32.xlu0 %v378
    %v462 = vpop.xlane.xlu0 %461
    %463 = vmax.xlane.f32.xlu0 %v381
    %v464 = vpop.xlane.xlu0 %463
    %465 = vmax.xlane.f32.xlu0 %v384
    %v466 = vpop.xlane.xlu0 %465
    %467 = vmax.xlane.f32.xlu0 %v387
    %v468 = vpop.xlane.xlu0 %467
    %469 = vmax.xlane.f32.xlu0 %v390
    %v470 = vpop.xlane.xlu0 %469
    %471 = vmax.xlane.f32.xlu0 %v393
    %v472 = vpop.xlane.xlu0 %471
    %473 = vmax.xlane.f32.xlu0 %v396
    %v474 = vpop.xlane.xlu0 %473
    %475 = vmax.xlane.f32.xlu0 %v399
    %v476 = vpop.xlane.xlu0 %475
    %477 = vmax.xlane.f32.xlu0 %v402
    %v478 = vpop.xlane.xlu0 %477
    %479 = vmax.xlane.f32.xlu0 %v405
    %v480 = vpop.xlane.xlu0 %479
    %481 = vmax.xlane.f32.xlu0 %v408
    %v482 = vpop.xlane.xlu0 %481
    %483 = vmax.xlane.f32.xlu0 %v411
    %v484 = vpop.xlane.xlu0 %483
    %485 = vmax.xlane.f32.xlu0 %v414
    %v486 = vpop.xlane.xlu0 %485
    %487 = vmax.xlane.f32.xlu0 %v417
    %v488 = vpop.xlane.xlu0 %487
    %489 = vmax.xlane.f32.xlu0 %v420
    %v490 = vpop.xlane.xlu0 %489
    %491 = vmax.xlane.f32.xlu0 %v423
    %v492 = vpop.xlane.xlu0 %491
    %493 = vmax.xlane.f32.xlu0 %v426
    %v494 = vpop.xlane.xlu0 %493
    %495 = vmax.xlane.f32.xlu0 %v429
    %v496 = vpop.xlane.xlu0 %495
    %497 = vmax.xlane.f32.xlu0 %v432
    %v498 = vpop.xlane.xlu0 %497
    %499 = vmax.xlane.f32.xlu0 %v435
    %v500 = vpop.xlane.xlu0 %499
    %v501 = vsub.f32 %v342, %v438
    %v502 = vsub.f32 %v345, %v440
    %v503 = vsub.f32 %v348, %v442
    %v504 = vsub.f32 %v351, %v444
    %v505 = vsub.f32 %v354, %v446
    %v506 = vsub.f32 %v357, %v448
    %v507 = vsub.f32 %v360, %v450
    %v508 = vsub.f32 %v363, %v452
    %v509 = vsub.f32 %v366, %v454
    %v510 = vsub.f32 %v369, %v456
    %v511 = vsub.f32 %v372, %v458
    %v512 = vsub.f32 %v375, %v460
    %v513 = vsub.f32 %v378, %v462
    %v514 = vsub.f32 %v381, %v464
    %v515 = vsub.f32 %v384, %v466
    %v516 = vsub.f32 %v387, %v468
    %v517 = vsub.f32 %v390, %v470
    %v518 = vsub.f32 %v393, %v472
    %v519 = vsub.f32 %v396, %v474
    %v520 = vsub.f32 %v399, %v476
    %v521 = vsub.f32 %v402, %v478
    %v522 = vsub.f32 %v405, %v480
    %v523 = vsub.f32 %v408, %v482
    %v524 = vsub.f32 %v411, %v484
    %v525 = vsub.f32 %v414, %v486
    %v526 = vsub.f32 %v417, %v488
    %v527 = vsub.f32 %v420, %v490
    %v528 = vsub.f32 %v423, %v492
    %v529 = vsub.f32 %v426, %v494
    %v530 = vsub.f32 %v429, %v496
    %v531 = vsub.f32 %v432, %v498
    %v532 = vsub.f32 %v435, %v500
    %v533 = vmul.f32 %v501, 1.442695
    %v534 = vpow.pop %v533
    %v535 = vmul.f32 %v502, 1.442695
    %v536 = vpow.pop %v535
    %v537 = vmul.f32 %v503, 1.442695
    %v538 = vpow.pop %v537
    %v539 = vmul.f32 %v504, 1.442695
    %v540 = vpow.pop %v539
    %v541 = vmul.f32 %v505, 1.442695
    %v542 = vpow.pop %v541
    %v543 = vmul.f32 %v506, 1.442695
    %v544 = vpow.pop %v543
    %v545 = vmul.f32 %v507, 1.442695
    %v546 = vpow.pop %v545
    %v547 = vmul.f32 %v508, 1.442695
    %v548 = vpow.pop %v547
    %v549 = vmul.f32 %v509, 1.442695
    %v550 = vpow.pop %v549
    %v551 = vmul.f32 %v510, 1.442695
    %v552 = vpow.pop %v551
    %v553 = vmul.f32 %v511, 1.442695
    %v554 = vpow.pop %v553
    %v555 = vmul.f32 %v512, 1.442695
    %v556 = vpow.pop %v555
    %v557 = vmul.f32 %v513, 1.442695
    %v558 = vpow.pop %v557
    %v559 = vmul.f32 %v514, 1.442695
    %v560 = vpow.pop %v559
    %v561 = vmul.f32 %v515, 1.442695
    %v562 = vpow.pop %v561
    %v563 = vmul.f32 %v516, 1.442695
    %v564 = vpow.pop %v563
    %v565 = vmul.f32 %v517, 1.442695
    %v566 = vpow.pop %v565
    %v567 = vmul.f32 %v518, 1.442695
    %v568 = vpow.pop %v567
    %v569 = vmul.f32 %v519, 1.442695
    %v570 = vpow.pop %v569
    %v571 = vmul.f32 %v520, 1.442695
    %v572 = vpow.pop %v571
    %v573 = vmul.f32 %v521, 1.442695
    %v574 = vpow.pop %v573
    %v575 = vmul.f32 %v522, 1.442695
    %v576 = vpow.pop %v575
    %v577 = vmul.f32 %v523, 1.442695
    %v578 = vpow.pop %v577
    %v579 = vmul.f32 %v524, 1.442695
    %v580 = vpow.pop %v579
    %v581 = vmul.f32 %v525, 1.442695
    %v582 = vpow.pop %v581
    %v583 = vmul.f32 %v526, 1.442695
    %v584 = vpow.pop %v583
    %v585 = vmul.f32 %v527, 1.442695
    %v586 = vpow.pop %v585
    %v587 = vmul.f32 %v528, 1.442695
    %v588 = vpow.pop %v587
    %v589 = vmul.f32 %v529, 1.442695
    %v590 = vpow.pop %v589
    %v591 = vmul.f32 %v530, 1.442695
    %v592 = vpow.pop %v591
    %v593 = vmul.f32 %v531, 1.442695
    %v594 = vpow.pop %v593
    %v595 = vmul.f32 %v532, 1.442695
    %v596 = vpow.pop %v595
    %597 = vadd.xlane.f32.xlu0 %v534
    %v598 = vpop.xlane.xlu0 %597
    %599 = vadd.xlane.f32.xlu0 %v536
    %v600 = vpop.xlane.xlu0 %599
    %601 = vadd.xlane.f32.xlu0 %v538
    %v602 = vpop.xlane.xlu0 %601
    %603 = vadd.xlane.f32.xlu0 %v540
    %v604 = vpop.xlane.xlu0 %603
    %605 = vadd.xlane.f32.xlu0 %v542
    %v606 = vpop.xlane.xlu0 %605
    %607 = vadd.xlane.f32.xlu0 %v544
    %v608 = vpop.xlane.xlu0 %607
    %609 = vadd.xlane.f32.xlu0 %v546
    %v610 = vpop.xlane.xlu0 %609
    %611 = vadd.xlane.f32.xlu0 %v548
    %v612 = vpop.xlane.xlu0 %611
    %613 = vadd.xlane.f32.xlu0 %v550
    %v614 = vpop.xlane.xlu0 %613
    %615 = vadd.xlane.f32.xlu0 %v552
    %v616 = vpop.xlane.xlu0 %615
    %617 = vadd.xlane.f32.xlu0 %v554
    %v618 = vpop.xlane.xlu0 %617
    %619 = vadd.xlane.f32.xlu0 %v556
    %v620 = vpop.xlane.xlu0 %619
    %621 = vadd.xlane.f32.xlu0 %v558
    %v622 = vpop.xlane.xlu0 %621
    %623 = vadd.xlane.f32.xlu0 %v560
    %v624 = vpop.xlane.xlu0 %623
    %625 = vadd.xlane.f32.xlu0 %v562
    %v626 = vpop.xlane.xlu0 %625
    %627 = vadd.xlane.f32.xlu0 %v564
    %v628 = vpop.xlane.xlu0 %627
    %629 = vadd.xlane.f32.xlu0 %v566
    %v630 = vpop.xlane.xlu0 %629
    %631 = vadd.xlane.f32.xlu0 %v568
    %v632 = vpop.xlane.xlu0 %631
    %633 = vadd.xlane.f32.xlu0 %v570
    %v634 = vpop.xlane.xlu0 %633
    %635 = vadd.xlane.f32.xlu0 %v572
    %v636 = vpop.xlane.xlu0 %635
    %637 = vadd.xlane.f32.xlu0 %v574
    %v638 = vpop.xlane.xlu0 %637
    %639 = vadd.xlane.f32.xlu0 %v576
    %v640 = vpop.xlane.xlu0 %639
    %641 = vadd.xlane.f32.xlu0 %v578
    %v642 = vpop.xlane.xlu0 %641
    %643 = vadd.xlane.f32.xlu0 %v580
    %v644 = vpop.xlane.xlu0 %643
    %645 = vadd.xlane.f32.xlu0 %v582
    %v646 = vpop.xlane.xlu0 %645
    %647 = vadd.xlane.f32.xlu0 %v584
    %v648 = vpop.xlane.xlu0 %647
    %649 = vadd.xlane.f32.xlu0 %v586
    %v650 = vpop.xlane.xlu0 %649
    %651 = vadd.xlane.f32.xlu0 %v588
    %v652 = vpop.xlane.xlu0 %651
    %653 = vadd.xlane.f32.xlu0 %v590
    %v654 = vpop.xlane.xlu0 %653
    %655 = vadd.xlane.f32.xlu0 %v592
    %v656 = vpop.xlane.xlu0 %655
    %657 = vadd.xlane.f32.xlu0 %v594
    %v658 = vpop.xlane.xlu0 %657
    %659 = vadd.xlane.f32.xlu0 %v596
    %v660 = vpop.xlane.xlu0 %659
    %v661 = vrcp.pop %v598
    %v662 = vrcp.pop %v600
    %v663 = vrcp.pop %v602
    %v664 = vrcp.pop %v604
    %v665 = vrcp.pop %v606
    %v666 = vrcp.pop %v608
    %v667 = vrcp.pop %v610
    %v668 = vrcp.pop %v612
    %v669 = vrcp.pop %v614
    %v670 = vrcp.pop %v616
    %v671 = vrcp.pop %v618
    %v672 = vrcp.pop %v620
    %v673 = vrcp.pop %v622
    %v674 = vrcp.pop %v624
    %v675 = vrcp.pop %v626
    %v676 = vrcp.pop %v628
    %v677 = vrcp.pop %v630
    %v678 = vrcp.pop %v632
    %v679 = vrcp.pop %v634
    %v680 = vrcp.pop %v636
    %v681 = vrcp.pop %v638
    %v682 = vrcp.pop %v640
    %v683 = vrcp.pop %v642
    %v684 = vrcp.pop %v644
    %v685 = vrcp.pop %v646
    %v686 = vrcp.pop %v648
    %v687 = vrcp.pop %v650
    %v688 = vrcp.pop %v652
    %v689 = vrcp.pop %v654
    %v690 = vrcp.pop %v656
    %v691 = vrcp.pop %v658
    %v692 = vrcp.pop %v660
    %v693 = vmul.f32 %v598, %v661
    %v694 = vmul.f32 %v600, %v662
    %v695 = vmul.f32 %v602, %v663
    %v696 = vmul.f32 %v604, %v664
    %v697 = vmul.f32 %v606, %v665
    %v698 = vmul.f32 %v608, %v666
    %v699 = vmul.f32 %v610, %v667
    %v700 = vmul.f32 %v612, %v668
    %v701 = vmul.f32 %v614, %v669
    %v702 = vmul.f32 %v616, %v670
    %v703 = vmul.f32 %v618, %v671
    %v704 = vmul.f32 %v620, %v672
    %v705 = vmul.f32 %v622, %v673
    %v706 = vmul.f32 %v624, %v674
    %v707 = vmul.f32 %v626, %v675
    %v708 = vmul.f32 %v628, %v676
    %v709 = vmul.f32 %v630, %v677
    %v710 = vmul.f32 %v632, %v678
    %v711 = vmul.f32 %v634, %v679
    %v712 = vmul.f32 %v636, %v680
    %v713 = vmul.f32 %v638, %v681
    %v714 = vmul.f32 %v640, %v682
    %v715 = vmul.f32 %v642, %v683
    %v716 = vmul.f32 %v644, %v684
    %v717 = vmul.f32 %v646, %v685
    %v718 = vmul.f32 %v648, %v686
    %v719 = vmul.f32 %v650, %v687
    %v720 = vmul.f32 %v652, %v688
    %v721 = vmul.f32 %v654, %v689
    %v722 = vmul.f32 %v656, %v690
    %v723 = vmul.f32 %v658, %v691
    %v724 = vmul.f32 %v660, %v692
    %v725 = vsub.f32 2.0, %v693
    %v726 = vsub.f32 2.0, %v694
    %v727 = vsub.f32 2.0, %v695
    %v728 = vsub.f32 2.0, %v696
    %v729 = vsub.f32 2.0, %v697
    %v730 = vsub.f32 2.0, %v698
    %v731 = vsub.f32 2.0, %v699
    %v732 = vsub.f32 2.0, %v700
    %v733 = vsub.f32 2.0, %v701
    %v734 = vsub.f32 2.0, %v702
    %v735 = vsub.f32 2.0, %v703
    %v736 = vsub.f32 2.0, %v704
    %v737 = vsub.f32 2.0, %v705
    %v738 = vsub.f32 2.0, %v706
    %v739 = vsub.f32 2.0, %v707
    %v740 = vsub.f32 2.0, %v708
    %v741 = vsub.f32 2.0, %v709
    %v742 = vsub.f32 2.0, %v710
    %v743 = vsub.f32 2.0, %v711
    %v744 = vsub.f32 2.0, %v712
    %v745 = vsub.f32 2.0, %v713
    %v746 = vsub.f32 2.0, %v714
    %v747 = vsub.f32 2.0, %v715
    %v748 = vsub.f32 2.0, %v716
    %v749 = vsub.f32 2.0, %v717
    %v750 = vsub.f32 2.0, %v718
    %v751 = vsub.f32 2.0, %v719
    %v752 = vsub.f32 2.0, %v720
    %v753 = vsub.f32 2.0, %v721
    %v754 = vsub.f32 2.0, %v722
    %v755 = vsub.f32 2.0, %v723
    %v756 = vsub.f32 2.0, %v724
    %v757 = vmul.f32 %v661, %v725
    %v758 = vmul.f32 %v662, %v726
    %v759 = vmul.f32 %v663, %v727
    %v760 = vmul.f32 %v664, %v728
    %v761 = vmul.f32 %v665, %v729
    %v762 = vmul.f32 %v666, %v730
    %v763 = vmul.f32 %v667, %v731
    %v764 = vmul.f32 %v668, %v732
    %v765 = vmul.f32 %v669, %v733
    %v766 = vmul.f32 %v670, %v734
    %v767 = vmul.f32 %v671, %v735
    %v768 = vmul.f32 %v672, %v736
    %v769 = vmul.f32 %v673, %v737
    %v770 = vmul.f32 %v674, %v738
    %v771 = vmul.f32 %v675, %v739
    %v772 = vmul.f32 %v676, %v740
    %v773 = vmul.f32 %v677, %v741
    %v774 = vmul.f32 %v678, %v742
    %v775 = vmul.f32 %v679, %v743
    %v776 = vmul.f32 %v680, %v744
    %v777 = vmul.f32 %v681, %v745
    %v778 = vmul.f32 %v682, %v746
    %v779 = vmul.f32 %v683, %v747
    %v780 = vmul.f32 %v684, %v748
    %v781 = vmul.f32 %v685, %v749
    %v782 = vmul.f32 %v686, %v750
    %v783 = vmul.f32 %v687, %v751
    %v784 = vmul.f32 %v688, %v752
    %v785 = vmul.f32 %v689, %v753
    %v786 = vmul.f32 %v690, %v754
    %v787 = vmul.f32 %v691, %v755
    %v788 = vmul.f32 %v692, %v756
    %v789 = vmul.f32 %v534, %v757
    %v790 = vmul.f32 %v536, %v758
    %v791 = vmul.f32 %v538, %v759
    %v792 = vmul.f32 %v540, %v760
    %v793 = vmul.f32 %v542, %v761
    %v794 = vmul.f32 %v544, %v762
    %v795 = vmul.f32 %v546, %v763
    %v796 = vmul.f32 %v548, %v764
    %v797 = vmul.f32 %v550, %v765
    %v798 = vmul.f32 %v552, %v766
    %v799 = vmul.f32 %v554, %v767
    %v800 = vmul.f32 %v556, %v768
    %v801 = vmul.f32 %v558, %v769
    %v802 = vmul.f32 %v560, %v770
    %v803 = vmul.f32 %v562, %v771
    %v804 = vmul.f32 %v564, %v772
    %v805 = vmul.f32 %v566, %v773
    %v806 = vmul.f32 %v568, %v774
    %v807 = vmul.f32 %v570, %v775
    %v808 = vmul.f32 %v572, %v776
    %v809 = vmul.f32 %v574, %v777
    %v810 = vmul.f32 %v576, %v778
    %v811 = vmul.f32 %v578, %v779
    %v812 = vmul.f32 %v580, %v780
    %v813 = vmul.f32 %v582, %v781
    %v814 = vmul.f32 %v584, %v782
    %v815 = vmul.f32 %v586, %v783
    %v816 = vmul.f32 %v588, %v784
    %v817 = vmul.f32 %v590, %v785
    %v818 = vmul.f32 %v592, %v786
    %v819 = vmul.f32 %v594, %v787
    %v820 = vmul.f32 %v596, %v788
    %821 = vst [vmem:[#allocation2] sm:$0xff] %v789
    %822 = vst [vmem:[#allocation2 + $0x8] sm:$0xff] %v790
    %823 = vst [vmem:[#allocation2 + $0x10] sm:$0xff] %v791
    %824 = vst [vmem:[#allocation2 + $0x18] sm:$0xff] %v792
    %825 = vst [vmem:[#allocation2 + $0x20] sm:$0xff] %v793
    %826 = vst [vmem:[#allocation2 + $0x28] sm:$0xff] %v794
    %827 = vst [vmem:[#allocation2 + $0x30] sm:$0xff] %v795
    %828 = vst [vmem:[#allocation2 + $0x38] sm:$0xff] %v796
    %829 = vst [vmem:[#allocation2 + $0x40] sm:$0xff] %v797
    %830 = vst [vmem:[#allocation2 + $0x48] sm:$0xff] %v798
    %831 = vst [vmem:[#allocation2 + $0x50] sm:$0xff] %v799
    %832 = vst [vmem:[#allocation2 + $0x58] sm:$0xff] %v800
    %833 = vst [vmem:[#allocation2 + $0x60] sm:$0xff] %v801
    %834 = vst [vmem:[#allocation2 + $0x68] sm:$0xff] %v802
    %835 = vst [vmem:[#allocation2 + $0x70] sm:$0xff] %v803
    %836 = vst [vmem:[#allocation2 + $0x78] sm:$0xff] %v804
    %837 = vst [vmem:[#allocation2 + $0x80] sm:$0xff] %v805
    %838 = vst [vmem:[#allocation2 + $0x88] sm:$0xff] %v806
    %839 = vst [vmem:[#allocation2 + $0x90] sm:$0xff] %v807
    %840 = vst [vmem:[#allocation2 + $0x98] sm:$0xff] %v808
    %841 = vst [vmem:[#allocation2 + $0xa0] sm:$0xff] %v809
    %842 = vst [vmem:[#allocation2 + $0xa8] sm:$0xff] %v810
    %843 = vst [vmem:[#allocation2 + $0xb0] sm:$0xff] %v811
    %844 = vst [vmem:[#allocation2 + $0xb8] sm:$0xff] %v812
    %845 = vst [vmem:[#allocation2 + $0xc0] sm:$0xff] %v813
    %846 = vst [vmem:[#allocation2 + $0xc8] sm:$0xff] %v814
    %847 = vst [vmem:[#allocation2 + $0xd0] sm:$0xff] %v815
    %848 = vst [vmem:[#allocation2 + $0xd8] sm:$0xff] %v816
    %849 = vst [vmem:[#allocation2 + $0xe0] sm:$0xff] %v817
    %850 = vst [vmem:[#allocation2 + $0xe8] sm:$0xff] %v818
    %851 = vst [vmem:[#allocation2 + $0xf0] sm:$0xff] %v819
    %852 = vst [vmem:[#allocation2 + $0xf8] sm:$0xff] %v820
    // Predicated region
    $region22: #{tpu_custom_call.1} parent=1 // pred_check
      _
    $region23: #{tpu_custom_call.1} parent=1 // pred_check_branch
      %854 = sbr.rel (0) target = $region25
    $region24: #{tpu_custom_call.1} parent=1 // pred_region
      %856 = vsyncadd [#allocation3], 0
      %s857 = sshll.u32 [#allocation2], 4
      %s858 = int_to_ptr.vmem [resolvable:$true] %s857
      %s859 = sshll.u32 %s5, 4
      %s860 = int_to_ptr.hbm [resolvable:$true] %s859
      %865 = dma.vmem_to_hbm [thread:$0]  %s858, 4096, %s860, [#allocation3], 128, 128, 8
    $region25: #{tpu_custom_call.1} parent=1 // pred_fallthru
      _
    // Predicated region
    $region26: #{tpu_custom_call.1} parent=1 // pred_check
      _
    $region27: #{tpu_custom_call.1} parent=1 // pred_check_branch
      %867 = sbr.rel (0) target = $region29
    $region28: #{tpu_custom_call.1} parent=1 // pred_region
      %869 = dma.done [#allocation3], 4096
    $region29: #{tpu_custom_call.1} parent=1 // pred_fallthru
      _
    %870 = vsyncpa [#allocation3], 1

</llo_original>
